<compile_context>
chip_gen: v7x
topology: tpu7x:2x2x1
jax: 0.10.0
libtpu: 0.0.40
codegen_flags: <defaults>
</compile_context>

<pallas_src>
import functools

import jax
import jax.numpy as jnp
from jax.experimental import pallas as pl
from jax.experimental.pallas import tpu as pltpu


def _round_up(x, m):
    return ((x + m - 1) // m) * m


def _pick_tile_128(padded_dim, max_tile):
    """Largest multiple of 128 that divides `padded_dim` and is <= max_tile."""
    best = 128
    cand = 128
    while cand <= min(max_tile, padded_dim):
        if padded_dim % cand == 0:
            best = cand
        cand += 128
    return best


def _kernel_single_k(x_ref, w_ref, b_ref, o_ref, *, slope):
    # Collapsed-K path: one MXU dot per (tm, tn) output tile; bias + LeakyReLU fused.
    y = jnp.dot(x_ref[...].astype(jnp.bfloat16), w_ref[...],
                preferred_element_type=jnp.float32)
    y = y + b_ref[...]
    o_ref[...] = jnp.where(y > 0, y, slope * y).astype(o_ref.dtype)


def _kernel_k_loop(x_ref, w_ref, b_ref, o_ref, *, slope):
    # K-tiled path: accumulate directly into the resident f32 output block
    # (its index_map ignores k); bias folded into the init, LeakyReLU at the end.
    k = pl.program_id(2)

    @pl.when(k == 0)
    def _():
        o_ref[...] = jnp.broadcast_to(b_ref[...], o_ref.shape)

    o_ref[...] += jnp.dot(x_ref[...].astype(jnp.bfloat16), w_ref[...],
                          preferred_element_type=jnp.float32)

    @pl.when(k == pl.num_programs(2) - 1)
    def _():
        y = o_ref[...]
        o_ref[...] = jnp.where(y > 0, y, slope * y)


@functools.partial(
    jax.jit,
    static_argnames=("out_dim", "Kp", "Np", "tm", "tk", "tn", "slope"))
def _decoder_block_apply(x, wp, bp, *, out_dim, Kp, Np, tm, tk, tn, slope):
    M, K = x.shape

    # Single M tile for small batch so weights stream from HBM exactly once.
    tm = min(tm, _round_up(M, 8))
    Mp = _round_up(M, tm)

    # Pad activations only when actually needed (no-op for aligned shapes).
    if (Mp, Kp) != (M, K):
        x = jnp.pad(x, ((0, Mp - M), (0, Kp - K)))

    collapse_k = (tk == Kp)

    # VMEM budget from the actual (double-buffered) tile footprint, v7x-safe cap.
    tile_bytes = 2 * (tm * tk * 4 + tk * tn * 2 + tn * 4 + tm * tn * 4)
    vmem_limit = int(min(48 * 1024 * 1024, max(8 * 1024 * 1024, 2 * tile_bytes)))

    cost = pl.CostEstimate(
        flops=2 * Mp * Kp * Np,
        transcendentals=0,
        bytes_accessed=int(Mp * Kp * 4 + Kp * Np * 2 + Np * 4 + Mp * Np * 4),
    )

    if collapse_k:
        grid = (Mp // tm, Np // tn)
        kernel = functools.partial(_kernel_single_k, slope=slope)
        in_specs = [
            pl.BlockSpec((tm, Kp), lambda i, j: (i, 0)),
            pl.BlockSpec((Kp, tn), lambda i, j: (0, j)),
            pl.BlockSpec((1, tn), lambda i, j: (0, j)),
        ]
        out_specs = pl.BlockSpec((tm, tn), lambda i, j: (i, j))
        dims = ("parallel", "parallel")
    else:
        grid = (Mp // tm, Np // tn, Kp // tk)
        kernel = functools.partial(_kernel_k_loop, slope=slope)
        in_specs = [
            pl.BlockSpec((tm, tk), lambda i, j, k: (i, k)),
            pl.BlockSpec((tk, tn), lambda i, j, k: (k, j)),
            pl.BlockSpec((1, tn), lambda i, j, k: (0, j)),
        ]
        out_specs = pl.BlockSpec((tm, tn), lambda i, j, k: (i, j))
        dims = ("parallel", "parallel", "arbitrary")

    out_p = pl.pallas_call(
        kernel,
        out_shape=jax.ShapeDtypeStruct((Mp, Np), jnp.float32),
        grid_spec=pltpu.PrefetchScalarGridSpec(
            num_scalar_prefetch=0,
            grid=grid,
            in_specs=in_specs,
            out_specs=out_specs,
        ),
        compiler_params=pltpu.CompilerParams(
            dimension_semantics=dims,
            vmem_limit_bytes=vmem_limit,
        ),
        cost_estimate=cost,
    )(x, wp, bp)

    if (Mp, Np) == (M, out_dim):
        return out_p
    return out_p[:M, :out_dim]


class DecoderBlockPallas:
    """Eval-mode DecoderBlock: LeakyReLU(x @ W + b, 0.2); Dropout == identity."""

    def __init__(self, w, b, *, negative_slope=0.2, tm=256, tn=512, tk=1024):
        K, N = w.shape
        assert b.shape == (N,)
        self.in_dim, self.out_dim = K, N
        self.slope = float(negative_slope)

        # Lane-dense weight/output width: pad N up to a multiple of 128.
        Np = _round_up(N, 128)
        tn = _pick_tile_128(Np, tn)

        # Collapse K into a single full-extent block (no K padding, no reduction
        # grid axis) whenever the bf16 weight block stays small; else tile K.
        if K * tn * 2 <= 2 * 1024 * 1024:
            tk, Kp = K, K
        else:
            Kp = _round_up(K, 128)
            tk = _pick_tile_128(Kp, tk)

        self.tm, self.tn, self.tk = tm, tn, tk
        self.Np, self.Kp = Np, Kp

        # One-time pad + bf16 cast of parameters (hoisted off the hot path).
        wf = jnp.asarray(w, jnp.float32)
        bf = jnp.asarray(b, jnp.float32)
        self.wp = jnp.pad(wf, ((0, Kp - K), (0, Np - N))).astype(jnp.bfloat16)
        self.bp = jnp.pad(bf, (0, Np - N)).reshape(1, Np)

    def __call__(self, x):
        assert x.ndim == 2 and x.shape[1] == self.in_dim
        return _decoder_block_apply(
            x, self.wp, self.bp,
            out_dim=self.out_dim, Kp=self.Kp, Np=self.Np,
            tm=self.tm, tk=self.tk, tn=self.tn, slope=self.slope,
        )


if __name__ == "__main__":
    # --- Test 1: module-sized shapes (batch=8, in_dim=32, out_dim=64). ---
    batch, in_dim, out_dim = 8, 32, 64

    key = jax.random.PRNGKey(0)
    kx, kw, kb, kx2, kw2, kb2 = jax.random.split(key, 6)

    x = jax.random.normal(kx, (batch, in_dim), dtype=jnp.float32)
    bound = 1.0 / (in_dim ** 0.5)
    w = jax.random.uniform(kw, (in_dim, out_dim), jnp.float32, -bound, bound)
    b = jax.random.uniform(kb, (out_dim,), jnp.float32, -bound, bound)

    block = DecoderBlockPallas(w, b)          # params padded/cast once here
    out = jax.block_until_ready(block(x))

    # Reference: Linear + LeakyReLU(0.2); dropout identity in eval.
    # bf16-rounded inputs, f32 math -- same numerics as the MXU path.
    hp = jax.lax.Precision.HIGHEST
    x_r = x.astype(jnp.bfloat16).astype(jnp.float32)
    w_r = w.astype(jnp.bfloat16).astype(jnp.float32)
    y = jnp.dot(x_r, w_r, precision=hp) + b
    ref = jnp.where(y > 0, y, 0.2 * y)

    assert out.shape == (batch, out_dim)
    assert jnp.allclose(out, ref, atol=1e-3, rtol=1e-3)

    # Sanity: still close to the full-f32 reference.
    y32 = jnp.dot(x, w, precision=hp) + b
    ref32 = jnp.where(y32 > 0, y32, 0.2 * y32)
    assert jnp.allclose(out, ref32, atol=3e-2, rtol=3e-2)

    # --- Test 2: larger decoder layer exercising the K-tiled path. ---
    in2, out2 = 4096, 1024
    x2 = jax.random.normal(kx2, (batch, in2), dtype=jnp.float32)
    bound2 = 1.0 / (in2 ** 0.5)
    w2 = jax.random.uniform(kw2, (in2, out2), jnp.float32, -bound2, bound2)
    b2 = jax.random.uniform(kb2, (out2,), jnp.float32, -bound2, bound2)

    block2 = DecoderBlockPallas(w2, b2)
    out2_v = jax.block_until_ready(block2(x2))

    x2_r = x2.astype(jnp.bfloat16).astype(jnp.float32)
    w2_r = w2.astype(jnp.bfloat16).astype(jnp.float32)
    y2 = jnp.dot(x2_r, w2_r, precision=hp) + b2
    ref2 = jnp.where(y2 > 0, y2, 0.2 * y2)

    assert out2_v.shape == (batch, out2)
    assert jnp.allclose(out2_v, ref2, atol=5e-3, rtol=5e-3)

    print("KERNEL_OK")
</pallas_src>

<mosaic_0001>
module attributes {stable_mosaic.version = 11 : i64} {
  func.func @_kernel_single_k(%arg0: i32, %arg1: i32, %arg2: memref<8x32xf32, #tpu.memory_space<vmem>>, %arg3: memref<32x128xbf16, #tpu.memory_space<vmem>>, %arg4: memref<1x128xf32, #tpu.memory_space<vmem>>, %arg5: memref<8x128xf32, #tpu.memory_space<vmem>>) attributes {dimension_semantics = [#tpu.dimension_semantics<parallel>, #tpu.dimension_semantics<parallel>], iteration_bounds = array<i64: 1, 1>, scalar_prefetch = 0 : i64, scratch_operands = 0 : i64, tpu.core_type = #tpu.core_type<tc>, window_params = [{transform_indices = @transform_0, window_bounds = array<i64: 8, 32>}, {transform_indices = @transform_1, window_bounds = array<i64: 32, 128>}, {transform_indices = @transform_2, window_bounds = array<i64: 1, 128>}, {transform_indices = @transform_3, window_bounds = array<i64: 8, 128>}]} {
    %c0 = arith.constant 0 : index
    %c0_0 = arith.constant 0 : index
    %0 = vector.load %arg2[%c0, %c0_0] : memref<8x32xf32, #tpu.memory_space<vmem>>, vector<8x32xf32>
    %1 = arith.truncf %0 : vector<8x32xf32> to vector<8x32xbf16>
    %c0_1 = arith.constant 0 : index
    %c0_2 = arith.constant 0 : index
    %2 = vector.load %arg3[%c0_1, %c0_2] : memref<32x128xbf16, #tpu.memory_space<vmem>>, vector<32x128xbf16>
    %cst = arith.constant dense<0.000000e+00> : vector<8x128xf32>
    %3 = tpu.matmul %1, %2, %cst {dimension_numbers = #tpu.dot_dimension_numbers<[1], [0], [0], [1], [0, 0, 1, 1], [], []>} : vector<8x32xbf16>, vector<32x128xbf16>, vector<8x128xf32> -> vector<8x128xf32>
    %c0_3 = arith.constant 0 : index
    %c0_4 = arith.constant 0 : index
    %4 = vector.load %arg4[%c0_3, %c0_4] : memref<1x128xf32, #tpu.memory_space<vmem>>, vector<1x128xf32>
    %5 = vector.broadcast %4 : vector<1x128xf32> to vector<8x128xf32>
    %6 = arith.addf %3, %5 : vector<8x128xf32>
    %cst_5 = arith.constant 0.000000e+00 : f32
    %7 = vector.broadcast %cst_5 : f32 to vector<8x128xf32>
    %8 = arith.cmpf ogt, %6, %7 : vector<8x128xf32>
    %cst_6 = arith.constant 2.000000e-01 : f32
    %9 = vector.broadcast %cst_6 : f32 to vector<8x128xf32>
    %10 = arith.mulf %9, %6 : vector<8x128xf32>
    %11 = arith.select %8, %6, %10 : vector<8x128xi1>, vector<8x128xf32>
    %c0_7 = arith.constant 0 : index
    %c0_8 = arith.constant 0 : index
    %12 = vector.load %arg5[%c0_7, %c0_8] : memref<8x128xf32, #tpu.memory_space<vmem>>, vector<8x128xf32>
    tpu.vector_store %arg5[%c0_7, %c0_8], %11 {strides = array<i32>} : memref<8x128xf32, #tpu.memory_space<vmem>>, vector<8x128xf32>,
    return
  }
  func.func @transform_0(%arg0: i32, %arg1: i32) -> (i32, i32) {
    %c0_i32 = arith.constant 0 : i32
    %c0_i32_0 = arith.constant 0 : i32
    return %arg0, %c0_i32 : i32, i32
  }
  func.func @transform_1(%arg0: i32, %arg1: i32) -> (i32, i32) {
    %c0_i32 = arith.constant 0 : i32
    %c0_i32_0 = arith.constant 0 : i32
    return %c0_i32, %arg1 : i32, i32
  }
  func.func @transform_2(%arg0: i32, %arg1: i32) -> (i32, i32) {
    %c0_i32 = arith.constant 0 : i32
    %c0_i32_0 = arith.constant 0 : i32
    return %c0_i32, %arg1 : i32, i32
  }
  func.func @transform_3(%arg0: i32, %arg1: i32) -> (i32, i32) {
    %c0_i32 = arith.constant 0 : i32
    return %arg0, %arg1 : i32, i32
  }
}

</mosaic_0001>

<llo_original>
// kernel: _decoder_block_apply.1
$region0: #{_decoder_block_apply.1}
  #allocation0 [shape = 'u32[]', space=smem, size = 0x4, offset = 0x4, fixed_abs, tag = 'smem constant byte address 0x4 - core index']
  #allocation1 [shape = 'u32[144,128]{1,0:T(1,128)}', space=vmem, size = 0x12000, scoped, tag = 'internal scratch']
  %s0 = inlined_call_operand.hbm [shape: f32[8,32], index: 0, kind: input, shape index: {}]
  %s1 = inlined_call_operand.hbm [shape: bf16[32,128], index: 1, kind: input, shape index: {}]
  %s2 = inlined_call_operand.vmem [shape: f32[1,128], index: 2, kind: input, shape index: {}]
  %s3 = inlined_call_operand.hbm [shape: f32[8,128], index: 3, kind: output, shape index: {}]
  %s4 = sld [smem:[#allocation0]]
  $region30: #{_decoder_block_apply.1} parent=0
    _
  %s6 = ssub.s32 1, %s4
  %s7 = scalar_select 0, %s6, %s4
  $region1: #{_decoder_block_apply.1} parent=0
    #allocation2 [shape = 'u8[4096]{0}', space=vmem, size = 0x1000, scoped, tag = 'input window, operand 0, single buffered']
    #allocation3 [shape = 's32[1]{0}', space=sflag, size = 0x4, scoped, tag = 'scoped memory for _decoder_block_apply.1']
    #allocation4 [shape = 's32[1]{0}', space=sflag, size = 0x4, scoped, tag = 'scoped memory for _decoder_block_apply.1']
    #allocation5 [shape = 'u8[8192]{0}', space=vmem, size = 0x2000, scoped, tag = 'input window, operand 1, single buffered']
    #allocation6 [shape = 's32[1]{0}', space=sflag, size = 0x4, scoped, tag = 'scoped memory for _decoder_block_apply.1']
    #allocation7 [shape = 'u8[4096]{0}', space=vmem, size = 0x1000, scoped, tag = 'output window, operand 0, single buffered']
    %8 = vsyncpa [#allocation3], 0
    %9 = vsyncpa [#allocation6], 0
    %10 = vsyncpa [#allocation4], 0
    // Predicated region
    $region2: #{_decoder_block_apply.1} parent=1 // pred_check
      _
    $region3: #{_decoder_block_apply.1} parent=1 // pred_check_branch
      %12 = sbr.rel (0) target = $region5
    $region4: #{_decoder_block_apply.1} parent=1 // pred_region
      %s14 = ssub.s32 128, 128
      %15 = vsyncadd [#allocation3], %s14
      %s17 = sshll.u32 [#allocation2], 4
      %s18 = int_to_ptr.vmem [resolvable:$true] %s17
      %20 = dma.hbm_to_vmem [thread:$0]  %s0, 128, %s18, [#allocation3]
    $region5: #{_decoder_block_apply.1} parent=1 // pred_fallthru
      _
    // Predicated region
    $region6: #{_decoder_block_apply.1} parent=1 // pred_check
      _
    $region7: #{_decoder_block_apply.1} parent=1 // pred_check_branch
      %22 = sbr.rel (0) target = $region9
    $region8: #{_decoder_block_apply.1} parent=1 // pred_region
      %s24 = ssub.s32 256, 256
      %25 = vsyncadd [#allocation6], %s24
      %s26 = sshll.u32 [#allocation5], 4
      %s27 = int_to_ptr.vmem [resolvable:$true] %s26
      %32 = dma.hbm_to_vmem [thread:$0]  %s1, 256, %s27, [#allocation6], 64, 64, 4
    $region9: #{_decoder_block_apply.1} parent=1 // pred_fallthru
      _
    // Predicated region
    $region10: #{_decoder_block_apply.1} parent=1 // pred_check
      _
    $region11: #{_decoder_block_apply.1} parent=1 // pred_check_branch
      %34 = sbr.rel (0) target = $region13
    $region12: #{_decoder_block_apply.1} parent=1 // pred_region
      _
    $region13: #{_decoder_block_apply.1} parent=1 // pred_fallthru
      _
    // Predicated region
    $region14: #{_decoder_block_apply.1} parent=1 // pred_check
      _
    $region15: #{_decoder_block_apply.1} parent=1 // pred_check_branch
      %36 = sbr.rel (0) target = $region17
    $region16: #{_decoder_block_apply.1} parent=1 // pred_region
      %37 = dma.done [#allocation3], 128
    $region17: #{_decoder_block_apply.1} parent=1 // pred_fallthru
      _
    // Predicated region
    $region18: #{_decoder_block_apply.1} parent=1 // pred_check
      _
    $region19: #{_decoder_block_apply.1} parent=1 // pred_check_branch
      %39 = sbr.rel (0) target = $region21
    $region20: #{_decoder_block_apply.1} parent=1 // pred_region
      %40 = dma.done [#allocation6], 256
    $region21: #{_decoder_block_apply.1} parent=1 // pred_fallthru
      _
    %v42 = vld [vmem:[#allocation2] sm:$0xff]
    %v43 = vpack.c.bf16 %v42, %v42
    %v44 = vld [vmem:[#allocation5] sm:$0xf]
    %v45 = vld [vmem:[#allocation5 + $0x4] sm:$0xf]
    %v46 = vld [vmem:[#allocation5 + $0x8] sm:$0xf]
    %v47 = vld [vmem:[#allocation5 + $0xc] sm:$0xf]
    %v48 = vld [vmem:[%s2] sm:$0x1]
    %v50 = vlaneseq
    %v51 = vshrl.u32 %v50, 7
    %v52 = vsub.s32 0, %v51
    %v53 = vrot.slane %v48, %v52
    %v59 = vunpack.c.l.b16 %v44
    %v60 = vunpack.c.l.b16 %v45
    %v61 = vunpack.c.l.b16 %v46
    %v62 = vunpack.c.l.b16 %v47
    %v63 = vpack.c.b16 %v60, %v59
    %v64 = vpack.c.b16 %v62, %v61
    %vm67 = vcmask 261120
    %v69 = vsel %vm67, %v43, 0
    %71 = vmatprep.subr.bf16.mxu0 0
    %72 = vmatpush1.bf16.msra.mxu0 %v63
    %73 = vmatprep.subr.bf16.mxu0 0
    %74 = vmatpush1.bf16.msra.mxu0 %v64
    %75 = vmatprep.subr.bf16.mxu0 0
    %76 = vmatpush1.bf16.msra.mxu0 0
    %77 = vmatprep.subr.bf16.mxu0 0
    %78 = vmatpush1.bf16.msra.mxu0 0
    %79 = vmatprep.subr.bf16.mxu0 0
    %80 = vmatpush1.bf16.msra.mxu0 0
    %81 = vmatprep.subr.bf16.mxu0 0
    %82 = vmatpush1.bf16.msra.mxu0 0
    %83 = vmatprep.subr.bf16.mxu0 0
    %84 = vmatpush1.bf16.msra.mxu0 0
    %85 = vmatprep.subr.bf16.mxu0 0
    %86 = vmatpush1.bf16.msra.mxu0 0
    %87 = vmatprep.subr.bf16.mxu0 0
    %88 = vmatpush1.bf16.msra.mxu0 0
    %89 = vmatprep.subr.bf16.mxu0 0
    %90 = vmatpush1.bf16.msra.mxu0 0
    %91 = vmatprep.subr.bf16.mxu0 0
    %92 = vmatpush1.bf16.msra.mxu0 0
    %93 = vmatprep.subr.bf16.mxu0 0
    %94 = vmatpush1.bf16.msra.mxu0 0
    %95 = vmatprep.subr.bf16.mxu0 0
    %96 = vmatpush1.bf16.msra.mxu0 0
    %97 = vmatprep.subr.bf16.mxu0 0
    %98 = vmatpush1.bf16.msra.mxu0 0
    %99 = vmatprep.subr.bf16.mxu0 0
    %100 = vmatpush1.bf16.msra.mxu0 0
    %101 = vmatprep.subr.bf16.mxu0 0
    %102 = vmatpush1.bf16.msra.mxu0 0
    %103 = vmatprep.mubr.bf16.mxu0 0
    %104 = vmatmul.mubr.bf16.gmra.mrb[0].mxu0 %v69
    %v105 = vpop.f32.mrb[0].mxu0
    %v106 = vadd.f32 %v53, %v105
    %v107 = vpop.f32.mrb[0].mxu0
    %v108 = vpop.f32.mrb[0].mxu0
    %v109 = vpop.f32.mrb[0].mxu0
    %110 = vdwg.mxu0
    %vm111 = vcmp.gt.f32.partialorder %v106, 0.0
    %v112 = vmul.f32 %v106, 0.2
    %v113 = vsel %vm111, %v106, %v112
    %114 = vst [vmem:[#allocation7] sm:$0xff] %v113
    // Predicated region
    $region22: #{_decoder_block_apply.1} parent=1 // pred_check
      _
    $region23: #{_decoder_block_apply.1} parent=1 // pred_check_branch
      %116 = sbr.rel (0) target = $region25
    $region24: #{_decoder_block_apply.1} parent=1 // pred_region
      %s118 = ssub.s32 128, 128
      %119 = vsyncadd [#allocation4], %s118
      %s121 = sshll.u32 [#allocation7], 4
      %s122 = int_to_ptr.vmem [resolvable:$true] %s121
      %124 = dma.vmem_to_hbm [thread:$0]  %s122, 128, %s3, [#allocation4]
    $region25: #{_decoder_block_apply.1} parent=1 // pred_fallthru
      _
    // Predicated region
    $region26: #{_decoder_block_apply.1} parent=1 // pred_check
      _
    $region27: #{_decoder_block_apply.1} parent=1 // pred_check_branch
      %126 = sbr.rel (0) target = $region29
    $region28: #{_decoder_block_apply.1} parent=1 // pred_region
      %127 = dma.done [#allocation4], 128
    $region29: #{_decoder_block_apply.1} parent=1 // pred_fallthru
      _
    %128 = vsyncpa [#allocation3], 1
    %129 = vsyncpa [#allocation6], 1
    %130 = vsyncpa [#allocation4], 1

</llo_original>
